<compile_context>
chip_gen: v7x
topology: tpu7x:2x2x1
jax: 0.10.0
libtpu: 0.0.40
codegen_flags: <defaults>
</compile_context>

<pallas_src>
import math
import functools

import jax
import jax.numpy as jnp
from jax import lax
from jax.experimental import pallas as pl
from jax.experimental.pallas import tpu as pltpu


def _round_up(x, m):
    return ((x + m - 1) // m) * m


def _exact_gelu(x):
    # torch.nn.GELU() default: 0.5 * x * (1 + erf(x / sqrt(2)))
    return 0.5 * x * (1.0 + lax.erf(x * (1.0 / math.sqrt(2.0))))


def _pick_row_tile(rows, max_tile):
    """Largest row tile (multiple of 8, <= max_tile) with <=12.5% padding waste."""
    rows8 = _round_up(rows, 8)
    if rows8 <= max_tile:
        return rows8
    for cand in (512, 384, 256, 192, 128, 96, 64, 32, 16, 8):
        if cand > max_tile:
            continue
        padded = pl.cdiv(rows, cand) * cand
        if (padded - rows) / rows <= 0.125:
            return cand
    return min(128, max_tile)


def _ffn_delta_kernel(gamma_ref, h_ref, w0_ref, w1_ref, wot_ref, o_ref, x_ref,
                      *, d_actual, eps):
    """One (row-tile, F-tile) grid step of the pre-LN gated-GELU FFN block.

    gamma_ref: (1, Dp)   f32   LayerNorm weight (same block every step)
    h_ref:     (TR, Dp)  h-dt  hidden-state row tile (block index constant over kf)
    w0_ref:    (Dp, tf)  bf16  W0^T F-tile (gate projection)
    w1_ref:    (Dp, tf)  bf16  W1^T F-tile (value projection)
    wot_ref:   (tf, Dp)  bf16  Wout^T F-tile
    o_ref:     (TR, Dp)  f32   output row tile; VMEM-resident across kf and used
                               directly as the accumulator (init = residual h).
    x_ref:     (TR, Dp)  bf16  scratch: normalized activation, computed at kf==0
    """
    kf = pl.program_id(1)

    @pl.when(kf == 0)
    def _():
        h = h_ref[...].astype(jnp.float32)
        # RMS layernorm (model_center LayerNorm, bias=False branch). Padded lanes
        # (>= d_actual) are zero, so sum/d_actual is the true mean of squares.
        var = jnp.sum(h * h, axis=-1, keepdims=True) * (1.0 / d_actual)
        x = h * lax.rsqrt(var + eps) * gamma_ref[...].astype(jnp.float32)
        x_ref[...] = x.astype(x_ref.dtype)
        # Pre-layernorm residual: seed the resident output block with the raw input;
        # the FFN output accumulates on top of it across the F tiles.
        o_ref[...] = h

    # Gated-GELU feed forward, one F-tile slice.
    x = x_ref[...]
    gate = jnp.dot(x, w0_ref[...], preferred_element_type=jnp.float32)   # (TR, tf)
    up = jnp.dot(x, w1_ref[...], preferred_element_type=jnp.float32)     # (TR, tf)
    inner = (_exact_gelu(gate) * up).astype(wot_ref.dtype)
    o_ref[...] += jnp.dot(inner, wot_ref[...], preferred_element_type=jnp.float32)


def prepare_ffn_weights(w0, w1, wo, *, f_tile=512, weight_dtype=jnp.bfloat16):
    """Cast / transpose / pad the FFN weights into the kernel's streaming layout.

    Call ONCE at model init and cache the result across forward calls (hoisting the
    weight preprocessing out of the per-call path). gamma is NOT folded here — it is
    applied inside the kernel — so these tensors only change when the FFN weights do.

    Returns (w0t, w1t, wot, tf) with
      w0t, w1t: (Dp, Fp) weight_dtype   (Dp = round_up(D,128), Fp = multiple of tf)
      wot:      (Fp, Dp) weight_dtype
    """
    F_, D = w0.shape
    assert w1.shape == (F_, D) and wo.shape == (D, F_)
    Dp = _round_up(D, 128)
    tf = min(_round_up(f_tile, 128), _round_up(F_, 128))
    Fp = pl.cdiv(F_, tf) * tf
    # Cast to the narrow MXU dtype *before* transposing to halve the bytes moved.
    w0t = jnp.transpose(w0.astype(weight_dtype))   # (D, F)
    w1t = jnp.transpose(w1.astype(weight_dtype))   # (D, F)
    wot = jnp.transpose(wo.astype(weight_dtype))   # (F, D)
    if (Dp, Fp) != (D, F_):
        w0t = jnp.pad(w0t, ((0, Dp - D), (0, Fp - F_)))
        w1t = jnp.pad(w1t, ((0, Dp - D), (0, Fp - F_)))
        wot = jnp.pad(wot, ((0, Fp - F_), (0, Dp - D)))
    return w0t, w1t, wot, tf


def ffn_delta_block(hidden_states, gamma, w0, w1, wo, *, eps=1e-5,
                    row_tile=512, f_tile=512, prepared_weights=None,
                    vmem_limit_bytes=None):
    """FFNDeltaBlock forward: h + Wout(gelu(x@W0^T) * (x@W1^T)), x = RMSNorm(h)*gamma.

    hidden_states: (B, S, D); gamma: (D,); w0, w1: (F, D); wo: (D, F).
    On v7x (64 MiB VMEM), prefer row_tile=256..512 with f_tile=512; on v6e/v5e
    (128 MiB VMEM), row_tile=512 and f_tile up to 1024-2048 are safe.
    """
    B, S, D = hidden_states.shape
    rows = B * S

    if prepared_weights is None:
        prepared_weights = prepare_ffn_weights(w0, w1, wo, f_tile=f_tile)
    w0t, w1t, wot, tf = prepared_weights
    Dp, Fp = w0t.shape
    n_f = Fp // tf

    # ---- Row tiling (adaptive, avoids large pad waste for odd row counts) ----
    tr = _pick_row_tile(rows, row_tile)
    rows_p = pl.cdiv(rows, tr) * tr

    # ---- Activations: native half precision (fp16 -> bf16); pad only if needed ----
    h_dtype = hidden_states.dtype
    if h_dtype == jnp.float16:
        h_dtype = jnp.bfloat16
    h2d = hidden_states.reshape(rows, D).astype(h_dtype)
    if (rows_p, Dp) != (rows, D):
        h2d = jnp.pad(h2d, ((0, rows_p - rows), (0, Dp - D)))

    gamma2d = gamma.reshape(1, D).astype(jnp.float32)
    if Dp != D:
        gamma2d = jnp.pad(gamma2d, ((0, 0), (0, Dp - D)))

    h_isz = jnp.dtype(h_dtype).itemsize
    w_isz = jnp.dtype(w0t.dtype).itemsize

    # ---- VMEM budget: actual double-buffered blocks + headroom (not the full chip) ----
    if vmem_limit_bytes is None:
        blocks = (2 * 1 * Dp * 4                 # gamma
                  + 2 * tr * Dp * h_isz          # hidden-state row tile
                  + 2 * Dp * tf * w_isz * 2      # W0^T and W1^T tiles
                  + 2 * tf * Dp * w_isz          # Wout^T tile
                  + 2 * tr * Dp * 4              # resident output / accumulator
                  + tr * Dp * 2)                 # normalized-x scratch (bf16)
        intermediates = 6 * tr * tf * 4          # gate/up/gelu temps, retiling copies
        vmem_limit_bytes = min(int(blocks + intermediates) + 8 * 1024 * 1024,
                               128 * 1024 * 1024)

    grid = (rows_p // tr, n_f)                   # F (reduction) axis last / innermost
    n_row_tiles = rows_p // tr

    cost = pl.CostEstimate(
        flops=int(6 * rows_p * Dp * Fp),
        transcendentals=int(rows_p * Fp),
        bytes_accessed=int(rows_p * Dp * (h_isz + 4)
                           + n_row_tiles * 3 * Dp * Fp * w_isz),
    )

    out2d = pl.pallas_call(
        functools.partial(_ffn_delta_kernel, d_actual=D, eps=eps),
        out_shape=jax.ShapeDtypeStruct((rows_p, Dp), jnp.float32),
        grid_spec=pltpu.PrefetchScalarGridSpec(
            num_scalar_prefetch=0,
            grid=grid,
            in_specs=[
                pl.BlockSpec((1, Dp), lambda i, j: (0, 0)),      # gamma
                pl.BlockSpec((tr, Dp), lambda i, j: (i, 0)),     # hidden rows
                pl.BlockSpec((Dp, tf), lambda i, j: (0, j)),     # W0^T F-tile
                pl.BlockSpec((Dp, tf), lambda i, j: (0, j)),     # W1^T F-tile
                pl.BlockSpec((tf, Dp), lambda i, j: (j, 0)),     # Wout^T F-tile
            ],
            out_specs=pl.BlockSpec((tr, Dp), lambda i, j: (i, 0)),
            scratch_shapes=[
                pltpu.VMEM((tr, Dp), jnp.bfloat16),   # normalized activation x
            ],
        ),
        compiler_params=pltpu.CompilerParams(
            dimension_semantics=("parallel", "arbitrary"),
            vmem_limit_bytes=vmem_limit_bytes,
        ),
        cost_estimate=cost,
    )(gamma2d, h2d, w0t, w1t, wot)

    out = out2d[:rows, :D].reshape(B, S, D)
    # Match the module's (torch.half-regime) activation dtype on the way out.
    return out.astype(hidden_states.dtype)


def _reference(hidden_states, gamma, w0, w1, wo, eps=1e-5):
    h = hidden_states.astype(jnp.float32)
    var = jnp.mean(h * h, axis=-1, keepdims=True)
    x = h * lax.rsqrt(var + eps) * gamma.astype(jnp.float32)
    gate = _exact_gelu(x @ w0.astype(jnp.float32).T)
    up = x @ w1.astype(jnp.float32).T
    out = (gate * up) @ wo.astype(jnp.float32).T
    return h + out


if __name__ == "__main__":
    # Small shapes consistent with (batch, seq, dim_model) + dim_ff
    B, S, D, Fdim = 2, 8, 32, 64
    eps = 1e-5

    key = jax.random.PRNGKey(0)
    k_h, k_w0, k_w1, k_wo = jax.random.split(key, 4)

    # The torch module runs in torch.half; use bf16 activations (f32 math in-kernel).
    hidden_states = jax.random.normal(k_h, (B, S, D), dtype=jnp.float32).astype(jnp.bfloat16)

    # Deterministic parameter init matching the module __init__ shapes:
    #   LayerNorm weight: full(dim_model, init_var=1.0)
    #   FeedForward w_0.weight, w_1.weight: (dim_ff, dim_model), N(0, 0.02)
    #   FeedForward w_out.weight:           (dim_model, dim_ff), N(0, 0.02)
    gamma = jnp.full((D,), 1.0, dtype=jnp.float32)
    w0 = 0.02 * jax.random.normal(k_w0, (Fdim, D), dtype=jnp.float32)
    w1 = 0.02 * jax.random.normal(k_w1, (Fdim, D), dtype=jnp.float32)
    wo = 0.02 * jax.random.normal(k_wo, (D, Fdim), dtype=jnp.float32)

    # Production path: prepare (cast/transpose/pad) the weights once and reuse.
    prepared = prepare_ffn_weights(w0, w1, wo, f_tile=512)

    out = ffn_delta_block(hidden_states, gamma, w0, w1, wo, eps=eps,
                          prepared_weights=prepared)
    out = jax.block_until_ready(out)

    ref = _reference(hidden_states, gamma, w0, w1, wo, eps=eps)
    assert out.shape == (B, S, D)
    # bf16 activations / bf16 weights / bf16 output (f32 accumulation) vs f32 ref.
    assert jnp.allclose(out.astype(jnp.float32), ref, atol=2e-2, rtol=2e-2), \
        "mismatch vs reference"

    print("KERNEL_OK")
</pallas_src>

<mosaic_0001>
module attributes {stable_mosaic.version = 11 : i64} {
  func.func @_ffn_delta_kernel(%arg0: i32, %arg1: i32, %arg2: memref<1x128xf32, #tpu.memory_space<vmem>>, %arg3: memref<16x128xbf16, #tpu.memory_space<vmem>>, %arg4: memref<128x128xbf16, #tpu.memory_space<vmem>>, %arg5: memref<128x128xbf16, #tpu.memory_space<vmem>>, %arg6: memref<128x128xbf16, #tpu.memory_space<vmem>>, %arg7: memref<16x128xf32, #tpu.memory_space<vmem>>, %arg8: memref<16x128xbf16, #tpu.memory_space<vmem>>) attributes {dimension_semantics = [#tpu.dimension_semantics<parallel>, #tpu.dimension_semantics<arbitrary>], iteration_bounds = array<i64: 1, 1>, scalar_prefetch = 0 : i64, scratch_operands = 1 : i64, tpu.core_type = #tpu.core_type<tc>, window_params = [{pipeline_mode = #tpu.pipeline_mode<synchronous>, transform_indices = @transform_0, window_bounds = array<i64: 1, 128>}, {transform_indices = @transform_1, window_bounds = array<i64: 16, 128>}, {transform_indices = @transform_2, window_bounds = array<i64: 128, 128>}, {transform_indices = @transform_3, window_bounds = array<i64: 128, 128>}, {transform_indices = @transform_4, window_bounds = array<i64: 128, 128>}, {transform_indices = @transform_5, window_bounds = array<i64: 16, 128>}]} {
    %c0_i32 = arith.constant 0 : i32
    %0 = arith.cmpi eq, %arg1, %c0_i32 : i32
    %1 = arith.extui %0 : i1 to i32
    %c0_i32_0 = arith.constant 0 : i32
    %2 = arith.cmpi ne, %1, %c0_i32_0 : i32
    scf.if %2 {
      %c0_17 = arith.constant 0 : index
      %c0_18 = arith.constant 0 : index
      %23 = vector.load %arg3[%c0_17, %c0_18] : memref<16x128xbf16, #tpu.memory_space<vmem>>, vector<16x128xbf16>
      %24 = arith.extf %23 : vector<16x128xbf16> to vector<16x128xf32>
      %25 = arith.mulf %24, %24 : vector<16x128xf32>
      %cst_19 = arith.constant dense<0.000000e+00> : vector<16xf32>
      %26 = vector.multi_reduction <add>, %25, %cst_19 [1] : vector<16x128xf32> to vector<16xf32>
      %27 = vector.shape_cast %26 : vector<16xf32> to vector<16x1xf32>
      %cst_20 = arith.constant 3.125000e-02 : f32
      %28 = vector.broadcast %cst_20 : f32 to vector<16x1xf32>
      %29 = arith.mulf %27, %28 : vector<16x1xf32>
      %cst_21 = arith.constant 9.99999974E-6 : f32
      %30 = vector.broadcast %cst_21 : f32 to vector<16x1xf32>
      %31 = arith.addf %29, %30 : vector<16x1xf32>
      %32 = math.rsqrt %31 : vector<16x1xf32>
      %33 = vector.broadcast %32 : vector<16x1xf32> to vector<16x128xf32>
      %34 = arith.mulf %24, %33 : vector<16x128xf32>
      %c0_22 = arith.constant 0 : index
      %c0_23 = arith.constant 0 : index
      %35 = vector.load %arg2[%c0_22, %c0_23] : memref<1x128xf32, #tpu.memory_space<vmem>>, vector<1x128xf32>
      %36 = vector.broadcast %35 : vector<1x128xf32> to vector<16x128xf32>
      %37 = arith.mulf %34, %36 : vector<16x128xf32>
      %38 = arith.truncf %37 : vector<16x128xf32> to vector<16x128xbf16>
      %c0_24 = arith.constant 0 : index
      %c0_25 = arith.constant 0 : index
      %39 = vector.load %arg8[%c0_24, %c0_25] : memref<16x128xbf16, #tpu.memory_space<vmem>>, vector<16x128xbf16>
      tpu.vector_store %arg8[%c0_24, %c0_25], %38 {strides = array<i32>} : memref<16x128xbf16, #tpu.memory_space<vmem>>, vector<16x128xbf16>,
      %c0_26 = arith.constant 0 : index
      %c0_27 = arith.constant 0 : index
      %40 = vector.load %arg7[%c0_26, %c0_27] : memref<16x128xf32, #tpu.memory_space<vmem>>, vector<16x128xf32>
      tpu.vector_store %arg7[%c0_26, %c0_27], %24 {strides = array<i32>} : memref<16x128xf32, #tpu.memory_space<vmem>>, vector<16x128xf32>,
    } else {
    }
    %c0 = arith.constant 0 : index
    %c0_1 = arith.constant 0 : index
    %3 = vector.load %arg8[%c0, %c0_1] : memref<16x128xbf16, #tpu.memory_space<vmem>>, vector<16x128xbf16>
    %c0_2 = arith.constant 0 : index
    %c0_3 = arith.constant 0 : index
    %4 = vector.load %arg4[%c0_2, %c0_3] : memref<128x128xbf16, #tpu.memory_space<vmem>>, vector<128x128xbf16>
    %cst = arith.constant dense<0.000000e+00> : vector<16x128xf32>
    %5 = tpu.matmul %3, %4, %cst {dimension_numbers = #tpu.dot_dimension_numbers<[1], [0], [0], [1], [0, 0, 1, 1], [], []>} : vector<16x128xbf16>, vector<128x128xbf16>, vector<16x128xf32> -> vector<16x128xf32>
    %c0_4 = arith.constant 0 : index
    %c0_5 = arith.constant 0 : index
    %6 = vector.load %arg5[%c0_4, %c0_5] : memref<128x128xbf16, #tpu.memory_space<vmem>>, vector<128x128xbf16>
    %cst_6 = arith.constant dense<0.000000e+00> : vector<16x128xf32>
    %7 = tpu.matmul %3, %6, %cst_6 {dimension_numbers = #tpu.dot_dimension_numbers<[1], [0], [0], [1], [0, 0, 1, 1], [], []>} : vector<16x128xbf16>, vector<128x128xbf16>, vector<16x128xf32> -> vector<16x128xf32>
    %cst_7 = arith.constant 5.000000e-01 : f32
    %8 = vector.broadcast %cst_7 : f32 to vector<16x128xf32>
    %9 = arith.mulf %8, %5 : vector<16x128xf32>
    %cst_8 = arith.constant 0.707106769 : f32
    %10 = vector.broadcast %cst_8 : f32 to vector<16x128xf32>
    %11 = arith.mulf %5, %10 : vector<16x128xf32>
    %12 = math.erf %11 : vector<16x128xf32>
    %cst_9 = arith.constant 1.000000e+00 : f32
    %13 = vector.broadcast %cst_9 : f32 to vector<16x128xf32>
    %14 = arith.addf %13, %12 : vector<16x128xf32>
    %15 = arith.mulf %9, %14 : vector<16x128xf32>
    %16 = arith.mulf %15, %7 : vector<16x128xf32>
    %17 = arith.truncf %16 : vector<16x128xf32> to vector<16x128xbf16>
    %c0_10 = arith.constant 0 : index
    %c0_11 = arith.constant 0 : index
    %18 = vector.load %arg7[%c0_10, %c0_11] : memref<16x128xf32, #tpu.memory_space<vmem>>, vector<16x128xf32>
    %c0_12 = arith.constant 0 : index
    %c0_13 = arith.constant 0 : index
    %19 = vector.load %arg6[%c0_12, %c0_13] : memref<128x128xbf16, #tpu.memory_space<vmem>>, vector<128x128xbf16>
    %cst_14 = arith.constant dense<0.000000e+00> : vector<16x128xf32>
    %20 = tpu.matmul %17, %19, %cst_14 {dimension_numbers = #tpu.dot_dimension_numbers<[1], [0], [0], [1], [0, 0, 1, 1], [], []>} : vector<16x128xbf16>, vector<128x128xbf16>, vector<16x128xf32> -> vector<16x128xf32>
    %21 = arith.addf %18, %20 : vector<16x128xf32>
    %c0_15 = arith.constant 0 : index
    %c0_16 = arith.constant 0 : index
    %22 = vector.load %arg7[%c0_15, %c0_16] : memref<16x128xf32, #tpu.memory_space<vmem>>, vector<16x128xf32>
    tpu.vector_store %arg7[%c0_15, %c0_16], %21 {strides = array<i32>} : memref<16x128xf32, #tpu.memory_space<vmem>>, vector<16x128xf32>,
    return
  }
  func.func @transform_0(%arg0: i32, %arg1: i32) -> (i32, i32) {
    %c0_i32 = arith.constant 0 : i32
    %c0_i32_0 = arith.constant 0 : i32
    %c0_i32_1 = arith.constant 0 : i32
    return %c0_i32, %c0_i32_0 : i32, i32
  }
  func.func @transform_1(%arg0: i32, %arg1: i32) -> (i32, i32) {
    %c0_i32 = arith.constant 0 : i32
    %c0_i32_0 = arith.constant 0 : i32
    return %arg0, %c0_i32 : i32, i32
  }
  func.func @transform_2(%arg0: i32, %arg1: i32) -> (i32, i32) {
    %c0_i32 = arith.constant 0 : i32
    %c0_i32_0 = arith.constant 0 : i32
    return %c0_i32, %arg1 : i32, i32
  }
  func.func @transform_3(%arg0: i32, %arg1: i32) -> (i32, i32) {
    %c0_i32 = arith.constant 0 : i32
    %c0_i32_0 = arith.constant 0 : i32
    return %c0_i32, %arg1 : i32, i32
  }
  func.func @transform_4(%arg0: i32, %arg1: i32) -> (i32, i32) {
    %c0_i32 = arith.constant 0 : i32
    %c0_i32_0 = arith.constant 0 : i32
    return %arg1, %c0_i32 : i32, i32
  }
  func.func @transform_5(%arg0: i32, %arg1: i32) -> (i32, i32) {
    %c0_i32 = arith.constant 0 : i32
    %c0_i32_0 = arith.constant 0 : i32
    return %arg0, %c0_i32 : i32, i32
  }
}

</mosaic_0001>

<llo_original>
// kernel: tpu_custom_call.1
$region0: #{tpu_custom_call.1}
  #allocation0 [shape = 'u32[]', space=smem, size = 0x4, offset = 0x4, fixed_abs, tag = 'smem constant byte address 0x4 - core index']
  #allocation1 [shape = 'u32[144,128]{1,0:T(1,128)}', space=vmem, size = 0x12000, scoped, tag = 'internal scratch']
  #allocation2 [shape = 'bf16[16,128]{1,0:T(16,128)(2,1)}', space=vmem, size = 0x1000, scoped, tag = 'scratch operand']
  %s0 = inlined_call_operand.hbm [shape: f32[1,128], index: 0, kind: input, shape index: {}]
  %s1 = inlined_call_operand.hbm [shape: bf16[16,128], index: 1, kind: input, shape index: {}]
  %s2 = inlined_call_operand.hbm [shape: bf16[128,128], index: 2, kind: input, shape index: {}]
  %s3 = inlined_call_operand.hbm [shape: bf16[128,128], index: 3, kind: input, shape index: {}]
  %s4 = inlined_call_operand.hbm [shape: bf16[128,128], index: 4, kind: input, shape index: {}]
  %s5 = inlined_call_operand.hbm [shape: f32[16,128], index: 5, kind: output, shape index: {}]
  %s6 = sld [smem:[#allocation0]]
  $region54: #{tpu_custom_call.1} parent=0
    _
  %s8 = ssub.s32 1, %s6
  %s9 = scalar_select 0, %s8, %s6
  $region1: #{tpu_custom_call.1} parent=0
    #allocation3 [shape = 'u8[512]{0}', space=vmem, size = 0x400, scoped, tag = 'input window, operand 0, single buffered']
    #allocation4 [shape = 's32[1]{0}', space=sflag, size = 0x4, scoped, tag = 'scoped memory for tpu_custom_call.1']
    #allocation5 [shape = 's32[1]{0}', space=sflag, size = 0x4, scoped, tag = 'scoped memory for tpu_custom_call.1']
    #allocation6 [shape = 'u8[4096]{0}', space=vmem, size = 0x1000, scoped, tag = 'input window, operand 1, single buffered']
    #allocation7 [shape = 's32[1]{0}', space=sflag, size = 0x4, scoped, tag = 'scoped memory for tpu_custom_call.1']
    #allocation8 [shape = 'u8[32768]{0}', space=vmem, size = 0x8000, scoped, tag = 'input window, operand 2, single buffered']
    #allocation9 [shape = 'u8[32768]{0}', space=vmem, size = 0x8000, scoped, tag = 'input window, operand 3, single buffered']
    #allocation10 [shape = 's32[1]{0}', space=sflag, size = 0x4, scoped, tag = 'scoped memory for tpu_custom_call.1']
    #allocation11 [shape = 'u8[32768]{0}', space=vmem, size = 0x8000, scoped, tag = 'input window, operand 4, single buffered']
    #allocation12 [shape = 'u8[8192]{0}', space=vmem, size = 0x2000, scoped, tag = 'output window, operand 0, single buffered']
    %10 = vsyncpa [#allocation4], 0
    %11 = vsyncpa [#allocation7], 0
    %12 = vsyncpa [#allocation10], 0
    %13 = vsyncpa [#allocation5], 0
    // Predicated region
    $region2: #{tpu_custom_call.1} parent=1 // pred_check
      _
    $region3: #{tpu_custom_call.1} parent=1 // pred_check_branch
      %15 = sbr.rel (0) target = $region5
    $region4: #{tpu_custom_call.1} parent=1 // pred_region
      %s17 = ssub.s32 16, 16
      %18 = vsyncadd [#allocation4], %s17
      %s20 = sshll.u32 [#allocation3], 4
      %s21 = int_to_ptr.vmem [resolvable:$true] %s20
      %23 = dma.hbm_to_vmem [thread:$0]  %s0, 16, %s21, [#allocation4]
    $region5: #{tpu_custom_call.1} parent=1 // pred_fallthru
      _
    // Predicated region
    $region6: #{tpu_custom_call.1} parent=1 // pred_check
      _
    $region7: #{tpu_custom_call.1} parent=1 // pred_check_branch
      %25 = sbr.rel (0) target = $region9
    $region8: #{tpu_custom_call.1} parent=1 // pred_region
      %s27 = ssub.s32 128, 128
      %28 = vsyncadd [#allocation7], %s27
      %s29 = sshll.u32 [#allocation6], 4
      %s30 = int_to_ptr.vmem [resolvable:$true] %s29
      %35 = dma.hbm_to_vmem [thread:$0]  %s1, 128, %s30, [#allocation7], 64, 64, 4
    $region9: #{tpu_custom_call.1} parent=1 // pred_fallthru
      _
    // Predicated region
    $region10: #{tpu_custom_call.1} parent=1 // pred_check
      _
    $region11: #{tpu_custom_call.1} parent=1 // pred_check_branch
      %37 = sbr.rel (0) target = $region13
    $region12: #{tpu_custom_call.1} parent=1 // pred_region
      %s39 = ssub.s32 1024, 1024
      %40 = vsyncadd [#allocation7], %s39
      %s41 = sshll.u32 [#allocation8], 4
      %s42 = int_to_ptr.vmem [resolvable:$true] %s41
      %47 = dma.hbm_to_vmem [thread:$0]  %s2, 1024, %s42, [#allocation7], 64, 64, 4
    $region13: #{tpu_custom_call.1} parent=1 // pred_fallthru
      _
    // Predicated region
    $region14: #{tpu_custom_call.1} parent=1 // pred_check
      _
    $region15: #{tpu_custom_call.1} parent=1 // pred_check_branch
      %49 = sbr.rel (0) target = $region17
    $region16: #{tpu_custom_call.1} parent=1 // pred_region
      %s51 = ssub.s32 1024, 1024
      %52 = vsyncadd [#allocation10], %s51
      %s53 = sshll.u32 [#allocation9], 4
      %s54 = int_to_ptr.vmem [resolvable:$true] %s53
      %59 = dma.hbm_to_vmem [thread:$0]  %s3, 1024, %s54, [#allocation10], 64, 64, 4
    $region17: #{tpu_custom_call.1} parent=1 // pred_fallthru
      _
    // Predicated region
    $region18: #{tpu_custom_call.1} parent=1 // pred_check
      _
    $region19: #{tpu_custom_call.1} parent=1 // pred_check_branch
      %61 = sbr.rel (0) target = $region21
    $region20: #{tpu_custom_call.1} parent=1 // pred_region
      %s63 = ssub.s32 1024, 1024
      %64 = vsyncadd [#allocation10], %s63
      %s65 = sshll.u32 [#allocation11], 4
      %s66 = int_to_ptr.vmem [resolvable:$true] %s65
      %71 = dma.hbm_to_vmem [thread:$0]  %s4, 1024, %s66, [#allocation10], 64, 64, 4
    $region21: #{tpu_custom_call.1} parent=1 // pred_fallthru
      _
    // Predicated region
    $region22: #{tpu_custom_call.1} parent=1 // pred_check
      _
    $region23: #{tpu_custom_call.1} parent=1 // pred_check_branch
      %73 = sbr.rel (0) target = $region25
    $region24: #{tpu_custom_call.1} parent=1 // pred_region
      %74 = dma.done [#allocation4], 16
    $region25: #{tpu_custom_call.1} parent=1 // pred_fallthru
      _
    // Predicated region
    $region26: #{tpu_custom_call.1} parent=1 // pred_check
      _
    $region27: #{tpu_custom_call.1} parent=1 // pred_check_branch
      %76 = sbr.rel (0) target = $region29
    $region28: #{tpu_custom_call.1} parent=1 // pred_region
      %77 = dma.done [#allocation7], 128
    $region29: #{tpu_custom_call.1} parent=1 // pred_fallthru
      _
    // Predicated region
    $region30: #{tpu_custom_call.1} parent=1 // pred_check
      _
    $region31: #{tpu_custom_call.1} parent=1 // pred_check_branch
      %79 = sbr.rel (0) target = $region33
    $region32: #{tpu_custom_call.1} parent=1 // pred_region
      %80 = dma.done [#allocation7], 1024
    $region33: #{tpu_custom_call.1} parent=1 // pred_fallthru
      _
    // Predicated region
    $region34: #{tpu_custom_call.1} parent=1 // pred_check
      _
    $region35: #{tpu_custom_call.1} parent=1 // pred_check_branch
      %82 = sbr.rel (0) target = $region37
    $region36: #{tpu_custom_call.1} parent=1 // pred_region
      %83 = dma.done [#allocation10], 1024
    $region37: #{tpu_custom_call.1} parent=1 // pred_fallthru
      _
    // Predicated region
    $region38: #{tpu_custom_call.1} parent=1 // pred_check
      _
    $region39: #{tpu_custom_call.1} parent=1 // pred_check_branch
      %85 = sbr.rel (0) target = $region41
    $region40: #{tpu_custom_call.1} parent=1 // pred_region
      %86 = dma.done [#allocation10], 1024
    $region41: #{tpu_custom_call.1} parent=1 // pred_fallthru
      _
    %p88 = scmp.eq.s32.totalorder 0, 0
    // Predicated region
    $region42: #{tpu_custom_call.1} parent=1 // pred_check
      %p89 = pneg %p88
    $region43: #{tpu_custom_call.1} parent=1 // pred_check_branch
      %91 = sbr.rel (%p89) target = $region45
    $region44: #{tpu_custom_call.1} parent=1 // pred_region
      %v92 = vld [vmem:[#allocation6] sm:$0xf]
      %v93 = vld [vmem:[#allocation6 + $0x4] sm:$0xf]
      %v94 = vunpack.c.l.bf16 %v92
      %v95 = vunpack.c.l.bf16 %v93
      %v96 = vmul.f32 %v94, %v94
      %v97 = vmul.f32 %v95, %v95
      %98 = vadd.xlane.f32.xlu0 %v96
      %v99 = vpop.xlane.xlu0 %98
      %100 = vadd.xlane.f32.xlu0 %v97
      %v101 = vpop.xlane.xlu0 %100
      %v102 = vmul.f32 %v99, 0.03125
      %v103 = vmul.f32 %v101, 0.03125
      %v104 = vadd.f32 %v102, 1e-05
      %v105 = vadd.f32 %v103, 1e-05
      %v106 = vrsqrt.pop %v104
      %v107 = vrsqrt.pop %v105
      %v108 = vmul.f32 %v94, %v106
      %v109 = vmul.f32 %v95, %v107
      %v110 = vld [vmem:[#allocation3] sm:$0x1]
      %v112 = vlaneseq
      %v113 = vshrl.u32 %v112, 7
      %v114 = vsub.s32 0, %v113
      %v115 = vrot.slane %v110, %v114
      %v117 = vmul.f32 %v108, %v115
      %v118 = vmul.f32 %v109, %v115
      %v119 = vpack.c.bf16 %v118, %v117
      %120 = vst [vmem:[#allocation2] sm:$0xff] %v119
      %121 = vst [vmem:[#allocation12] sm:$0xff] %v94
      %122 = vst [vmem:[#allocation12 + $0x8] sm:$0xff] %v95
    $region45: #{tpu_custom_call.1} parent=1 // pred_fallthru
      _
    %v123 = vld [vmem:[#allocation2] sm:$0xff]
    %v124 = vld [vmem:[#allocation8] sm:$0xf]
    %v125 = vld [vmem:[#allocation8 + $0x4] sm:$0xf]
    %v126 = vld [vmem:[#allocation8 + $0x8] sm:$0xf]
    %v127 = vld [vmem:[#allocation8 + $0xc] sm:$0xf]
    %v128 = vld [vmem:[#allocation8 + $0x10] sm:$0xf]
    %v129 = vld [vmem:[#allocation8 + $0x14] sm:$0xf]
    %v130 = vld [vmem:[#allocation8 + $0x18] sm:$0xf]
    %v131 = vld [vmem:[#allocation8 + $0x1c] sm:$0xf]
    %v132 = vld [vmem:[#allocation8 + $0x20] sm:$0xf]
    %v133 = vld [vmem:[#allocation8 + $0x24] sm:$0xf]
    %v134 = vld [vmem:[#allocation8 + $0x28] sm:$0xf]
    %v135 = vld [vmem:[#allocation8 + $0x2c] sm:$0xf]
    %v136 = vld [vmem:[#allocation8 + $0x30] sm:$0xf]
    %v137 = vld [vmem:[#allocation8 + $0x34] sm:$0xf]
    %v138 = vld [vmem:[#allocation8 + $0x38] sm:$0xf]
    %v139 = vld [vmem:[#allocation8 + $0x3c] sm:$0xf]
    %v156 = vunpack.c.l.b16 %v124
    %v157 = vunpack.c.l.b16 %v125
    %v158 = vunpack.c.l.b16 %v126
    %v159 = vunpack.c.l.b16 %v127
    %v160 = vunpack.c.l.b16 %v128
    %v161 = vunpack.c.l.b16 %v129
    %v162 = vunpack.c.l.b16 %v130
    %v163 = vunpack.c.l.b16 %v131
    %v164 = vunpack.c.l.b16 %v132
    %v165 = vunpack.c.l.b16 %v133
    %v166 = vunpack.c.l.b16 %v134
    %v167 = vunpack.c.l.b16 %v135
    %v168 = vunpack.c.l.b16 %v136
    %v169 = vunpack.c.l.b16 %v137
    %v170 = vunpack.c.l.b16 %v138
    %v171 = vunpack.c.l.b16 %v139
    %v172 = vpack.c.b16 %v157, %v156
    %v173 = vpack.c.b16 %v159, %v158
    %v174 = vpack.c.b16 %v161, %v160
    %v175 = vpack.c.b16 %v163, %v162
    %v176 = vpack.c.b16 %v165, %v164
    %v177 = vpack.c.b16 %v167, %v166
    %v178 = vpack.c.b16 %v169, %v168
    %v179 = vpack.c.b16 %v171, %v170
    %188 = vmatprep.subr.bf16.mxu0 0
    %189 = vmatpush1.bf16.msra.mxu0 %v172
    %190 = vmatprep.subr.bf16.mxu0 0
    %191 = vmatpush1.bf16.msra.mxu0 %v173
    %192 = vmatprep.subr.bf16.mxu0 0
    %193 = vmatpush1.bf16.msra.mxu0 %v174
    %194 = vmatprep.subr.bf16.mxu0 0
    %195 = vmatpush1.bf16.msra.mxu0 %v175
    %196 = vmatprep.subr.bf16.mxu0 0
    %197 = vmatpush1.bf16.msra.mxu0 %v176
    %198 = vmatprep.subr.bf16.mxu0 0
    %199 = vmatpush1.bf16.msra.mxu0 %v177
    %200 = vmatprep.subr.bf16.mxu0 0
    %201 = vmatpush1.bf16.msra.mxu0 %v178
    %202 = vmatprep.subr.bf16.mxu0 0
    %203 = vmatpush1.bf16.msra.mxu0 %v179
    %204 = vmatprep.subr.bf16.mxu0 0
    %205 = vmatpush1.bf16.msra.mxu0 0
    %206 = vmatprep.subr.bf16.mxu0 0
    %207 = vmatpush1.bf16.msra.mxu0 0
    %208 = vmatprep.subr.bf16.mxu0 0
    %209 = vmatpush1.bf16.msra.mxu0 0
    %210 = vmatprep.subr.bf16.mxu0 0
    %211 = vmatpush1.bf16.msra.mxu0 0
    %212 = vmatprep.subr.bf16.mxu0 0
    %213 = vmatpush1.bf16.msra.mxu0 0
    %214 = vmatprep.subr.bf16.mxu0 0
    %215 = vmatpush1.bf16.msra.mxu0 0
    %216 = vmatprep.subr.bf16.mxu0 0
    %217 = vmatpush1.bf16.msra.mxu0 0
    %218 = vmatprep.subr.bf16.mxu0 0
    %219 = vmatpush1.bf16.msra.mxu0 0
    %220 = vmatprep.mubr.bf16.mxu0 0
    %221 = vmatmul.mubr.bf16.gmra.mrb[0].mxu0 %v123
    %v222 = vpop.f32.mrb[0].mxu0
    %v223 = vadd.f32 0.0, %v222
    %v224 = vpop.f32.mrb[0].mxu0
    %v225 = vpop.f32.mrb[0].mxu0
    %v226 = vadd.f32 0.0, %v225
    %v227 = vpop.f32.mrb[0].mxu0
    %228 = vdwg.mxu0
    %v229 = vld [vmem:[#allocation9] sm:$0xf]
    %v230 = vld [vmem:[#allocation9 + $0x4] sm:$0xf]
    %v231 = vld [vmem:[#allocation9 + $0x8] sm:$0xf]
    %v232 = vld [vmem:[#allocation9 + $0xc] sm:$0xf]
    %v233 = vld [vmem:[#allocation9 + $0x10] sm:$0xf]
    %v234 = vld [vmem:[#allocation9 + $0x14] sm:$0xf]
    %v235 = vld [vmem:[#allocation9 + $0x18] sm:$0xf]
    %v236 = vld [vmem:[#allocation9 + $0x1c] sm:$0xf]
    %v237 = vld [vmem:[#allocation9 + $0x20] sm:$0xf]
    %v238 = vld [vmem:[#allocation9 + $0x24] sm:$0xf]
    %v239 = vld [vmem:[#allocation9 + $0x28] sm:$0xf]
    %v240 = vld [vmem:[#allocation9 + $0x2c] sm:$0xf]
    %v241 = vld [vmem:[#allocation9 + $0x30] sm:$0xf]
    %v242 = vld [vmem:[#allocation9 + $0x34] sm:$0xf]
    %v243 = vld [vmem:[#allocation9 + $0x38] sm:$0xf]
    %v244 = vld [vmem:[#allocation9 + $0x3c] sm:$0xf]
    %v261 = vunpack.c.l.b16 %v229
    %v262 = vunpack.c.l.b16 %v230
    %v263 = vunpack.c.l.b16 %v231
    %v264 = vunpack.c.l.b16 %v232
    %v265 = vunpack.c.l.b16 %v233
    %v266 = vunpack.c.l.b16 %v234
    %v267 = vunpack.c.l.b16 %v235
    %v268 = vunpack.c.l.b16 %v236
    %v269 = vunpack.c.l.b16 %v237
    %v270 = vunpack.c.l.b16 %v238
    %v271 = vunpack.c.l.b16 %v239
    %v272 = vunpack.c.l.b16 %v240
    %v273 = vunpack.c.l.b16 %v241
    %v274 = vunpack.c.l.b16 %v242
    %v275 = vunpack.c.l.b16 %v243
    %v276 = vunpack.c.l.b16 %v244
    %v277 = vpack.c.b16 %v262, %v261
    %v278 = vpack.c.b16 %v264, %v263
    %v279 = vpack.c.b16 %v266, %v265
    %v280 = vpack.c.b16 %v268, %v267
    %v281 = vpack.c.b16 %v270, %v269
    %v282 = vpack.c.b16 %v272, %v271
    %v283 = vpack.c.b16 %v274, %v273
    %v284 = vpack.c.b16 %v276, %v275
    %293 = vmatprep.subr.bf16.mxu0 0
    %294 = vmatpush1.bf16.msra.mxu0 %v277
    %295 = vmatprep.subr.bf16.mxu0 0
    %296 = vmatpush1.bf16.msra.mxu0 %v278
    %297 = vmatprep.subr.bf16.mxu0 0
    %298 = vmatpush1.bf16.msra.mxu0 %v279
    %299 = vmatprep.subr.bf16.mxu0 0
    %300 = vmatpush1.bf16.msra.mxu0 %v280
    %301 = vmatprep.subr.bf16.mxu0 0
    %302 = vmatpush1.bf16.msra.mxu0 %v281
    %303 = vmatprep.subr.bf16.mxu0 0
    %304 = vmatpush1.bf16.msra.mxu0 %v282
    %305 = vmatprep.subr.bf16.mxu0 0
    %306 = vmatpush1.bf16.msra.mxu0 %v283
    %307 = vmatprep.subr.bf16.mxu0 0
    %308 = vmatpush1.bf16.msra.mxu0 %v284
    %309 = vmatprep.subr.bf16.mxu0 0
    %310 = vmatpush1.bf16.msra.mxu0 0
    %311 = vmatprep.subr.bf16.mxu0 0
    %312 = vmatpush1.bf16.msra.mxu0 0
    %313 = vmatprep.subr.bf16.mxu0 0
    %314 = vmatpush1.bf16.msra.mxu0 0
    %315 = vmatprep.subr.bf16.mxu0 0
    %316 = vmatpush1.bf16.msra.mxu0 0
    %317 = vmatprep.subr.bf16.mxu0 0
    %318 = vmatpush1.bf16.msra.mxu0 0
    %319 = vmatprep.subr.bf16.mxu0 0
    %320 = vmatpush1.bf16.msra.mxu0 0
    %321 = vmatprep.subr.bf16.mxu0 0
    %322 = vmatpush1.bf16.msra.mxu0 0
    %323 = vmatprep.subr.bf16.mxu0 0
    %324 = vmatpush1.bf16.msra.mxu0 0
    %325 = vmatprep.mubr.bf16.mxu0 0
    %326 = vmatmul.mubr.bf16.gmra.mrb[0].mxu0 %v123
    %v327 = vpop.f32.mrb[0].mxu0
    %v328 = vadd.f32 0.0, %v327
    %v329 = vpop.f32.mrb[0].mxu0
    %v330 = vpop.f32.mrb[0].mxu0
    %v331 = vadd.f32 0.0, %v330
    %v332 = vpop.f32.mrb[0].mxu0
    %333 = vdwg.mxu0
    %v334 = vmul.f32 %v223, 0.5
    %v335 = vmul.f32 %v226, 0.5
    %v336 = vmul.f32 %v223, 0.70710677
    %v337 = vmul.f32 %v226, 0.70710677
    %v338 = verf.f32.pop %v336
    %v339 = verf.f32.pop %v337
    %v340 = vadd.f32 %v338, 1.0
    %v341 = vadd.f32 %v339, 1.0
    %v342 = vmul.f32 %v334, %v340
    %v343 = vmul.f32 %v335, %v341
    %v344 = vmul.f32 %v342, %v328
    %v345 = vmul.f32 %v343, %v331
    %v346 = vpack.c.bf16 %v345, %v344
    %v347 = vld [vmem:[#allocation12] sm:$0xff]
    %v348 = vld [vmem:[#allocation12 + $0x8] sm:$0xff]
    %v349 = vld [vmem:[#allocation11] sm:$0xf]
    %v350 = vld [vmem:[#allocation11 + $0x4] sm:$0xf]
    %v351 = vld [vmem:[#allocation11 + $0x8] sm:$0xf]
    %v352 = vld [vmem:[#allocation11 + $0xc] sm:$0xf]
    %v353 = vld [vmem:[#allocation11 + $0x10] sm:$0xf]
    %v354 = vld [vmem:[#allocation11 + $0x14] sm:$0xf]
    %v355 = vld [vmem:[#allocation11 + $0x18] sm:$0xf]
    %v356 = vld [vmem:[#allocation11 + $0x1c] sm:$0xf]
    %v357 = vld [vmem:[#allocation11 + $0x20] sm:$0xf]
    %v358 = vld [vmem:[#allocation11 + $0x24] sm:$0xf]
    %v359 = vld [vmem:[#allocation11 + $0x28] sm:$0xf]
    %v360 = vld [vmem:[#allocation11 + $0x2c] sm:$0xf]
    %v361 = vld [vmem:[#allocation11 + $0x30] sm:$0xf]
    %v362 = vld [vmem:[#allocation11 + $0x34] sm:$0xf]
    %v363 = vld [vmem:[#allocation11 + $0x38] sm:$0xf]
    %v364 = vld [vmem:[#allocation11 + $0x3c] sm:$0xf]
    %v381 = vunpack.c.l.b16 %v349
    %v382 = vunpack.c.l.b16 %v350
    %v383 = vunpack.c.l.b16 %v351
    %v384 = vunpack.c.l.b16 %v352
    %v385 = vunpack.c.l.b16 %v353
    %v386 = vunpack.c.l.b16 %v354
    %v387 = vunpack.c.l.b16 %v355
    %v388 = vunpack.c.l.b16 %v356
    %v389 = vunpack.c.l.b16 %v357
    %v390 = vunpack.c.l.b16 %v358
    %v391 = vunpack.c.l.b16 %v359
    %v392 = vunpack.c.l.b16 %v360
    %v393 = vunpack.c.l.b16 %v361
    %v394 = vunpack.c.l.b16 %v362
    %v395 = vunpack.c.l.b16 %v363
    %v396 = vunpack.c.l.b16 %v364
    %v397 = vpack.c.b16 %v382, %v381
    %v398 = vpack.c.b16 %v384, %v383
    %v399 = vpack.c.b16 %v386, %v385
    %v400 = vpack.c.b16 %v388, %v387
    %v401 = vpack.c.b16 %v390, %v389
    %v402 = vpack.c.b16 %v392, %v391
    %v403 = vpack.c.b16 %v394, %v393
    %v404 = vpack.c.b16 %v396, %v395
    %413 = vmatprep.subr.bf16.mxu0 0
    %414 = vmatpush1.bf16.msra.mxu0 %v397
    %415 = vmatprep.subr.bf16.mxu0 0
    %416 = vmatpush1.bf16.msra.mxu0 %v398
    %417 = vmatprep.subr.bf16.mxu0 0
    %418 = vmatpush1.bf16.msra.mxu0 %v399
    %419 = vmatprep.subr.bf16.mxu0 0
    %420 = vmatpush1.bf16.msra.mxu0 %v400
    %421 = vmatprep.subr.bf16.mxu0 0
    %422 = vmatpush1.bf16.msra.mxu0 %v401
    %423 = vmatprep.subr.bf16.mxu0 0
    %424 = vmatpush1.bf16.msra.mxu0 %v402
    %425 = vmatprep.subr.bf16.mxu0 0
    %426 = vmatpush1.bf16.msra.mxu0 %v403
    %427 = vmatprep.subr.bf16.mxu0 0
    %428 = vmatpush1.bf16.msra.mxu0 %v404
    %429 = vmatprep.subr.bf16.mxu0 0
    %430 = vmatpush1.bf16.msra.mxu0 0
    %431 = vmatprep.subr.bf16.mxu0 0
    %432 = vmatpush1.bf16.msra.mxu0 0
    %433 = vmatprep.subr.bf16.mxu0 0
    %434 = vmatpush1.bf16.msra.mxu0 0
    %435 = vmatprep.subr.bf16.mxu0 0
    %436 = vmatpush1.bf16.msra.mxu0 0
    %437 = vmatprep.subr.bf16.mxu0 0
    %438 = vmatpush1.bf16.msra.mxu0 0
    %439 = vmatprep.subr.bf16.mxu0 0
    %440 = vmatpush1.bf16.msra.mxu0 0
    %441 = vmatprep.subr.bf16.mxu0 0
    %442 = vmatpush1.bf16.msra.mxu0 0
    %443 = vmatprep.subr.bf16.mxu0 0
    %444 = vmatpush1.bf16.msra.mxu0 0
    %445 = vmatprep.mubr.bf16.mxu0 0
    %446 = vmatmul.mubr.bf16.gmra.mrb[0].mxu0 %v346
    %v447 = vpop.f32.mrb[0].mxu0
    %v448 = vadd.f32 0.0, %v447
    %v449 = vpop.f32.mrb[0].mxu0
    %v450 = vpop.f32.mrb[0].mxu0
    %v451 = vadd.f32 0.0, %v450
    %v452 = vpop.f32.mrb[0].mxu0
    %453 = vdwg.mxu0
    %v454 = vadd.f32 %v347, %v448
    %v455 = vadd.f32 %v348, %v451
    %456 = vst [vmem:[#allocation12] sm:$0xff] %v454
    %457 = vst [vmem:[#allocation12 + $0x8] sm:$0xff] %v455
    // Predicated region
    $region46: #{tpu_custom_call.1} parent=1 // pred_check
      _
    $region47: #{tpu_custom_call.1} parent=1 // pred_check_branch
      %459 = sbr.rel (0) target = $region49
    $region48: #{tpu_custom_call.1} parent=1 // pred_region
      %s461 = ssub.s32 256, 256
      %462 = vsyncadd [#allocation5], %s461
      %s463 = sshll.u32 [#allocation12], 4
      %s464 = int_to_ptr.vmem [resolvable:$true] %s463
      %469 = dma.vmem_to_hbm [thread:$0]  %s464, 256, %s5, [#allocation5], 128, 128, 8
    $region49: #{tpu_custom_call.1} parent=1 // pred_fallthru
      _
    // Predicated region
    $region50: #{tpu_custom_call.1} parent=1 // pred_check
      _
    $region51: #{tpu_custom_call.1} parent=1 // pred_check_branch
      %471 = sbr.rel (0) target = $region53
    $region52: #{tpu_custom_call.1} parent=1 // pred_region
      %472 = dma.done [#allocation5], 256
    $region53: #{tpu_custom_call.1} parent=1 // pred_fallthru
      _
    %473 = vsyncpa [#allocation4], 1
    %474 = vsyncpa [#allocation7], 1
    %475 = vsyncpa [#allocation10], 1
    %476 = vsyncpa [#allocation5], 1

</llo_original>
